<compile_context>
chip_gen: v5e
topology: v5e:2x2
jax: 0.10.0
libtpu: 0.0.40
codegen_flags: <defaults>
</compile_context>

<pallas_src>
import jax
import jax.numpy as jnp
import numpy as np
from jax import lax
from jax.experimental import pallas as pl
from jax.experimental.pallas import tpu as pltpu

H1 = 200   # fc1 output features (nn.Linear(input_dim + output_dim, 200))
H2 = 300   # fc2 output features (nn.Linear(200, 300))
H1P = 256  # H1 zero-padded to a multiple of 128 lanes
H2P = 384  # H2 zero-padded to a multiple of 128 lanes


def _round_up(x, m):
    return ((x + m - 1) // m) * m


def critic_kernel(x_ref, w1_ref, w2_ref, p_ref, out_ref):
    """One batch tile of the Critic forward.

    x_ref  : (block_b, d_in)  [state|action] rows, compute dtype (bf16/f32)
    w1_ref : (d_in, H1P)      fc1 weight, zero-padded cols, compute dtype
    w2_ref : (H1P, H2P)       fc2 weight, zero-padded rows/cols, compute dtype
    p_ref  : (4, H2P) f32     row0 = b1 (first H1P lanes), row1 = b2,
                              row2 = fc3 weight row, row3[0] = b3
    out_ref: (1, 1, block_b)  q values, lane-major (batch along lanes)
    """
    # fc1: relu([state, action] @ W1 + b1)  -- merged matmul, f32 accumulate.
    h1 = jnp.dot(x_ref[...], w1_ref[...], preferred_element_type=jnp.float32)
    h1 = jnp.maximum(h1 + p_ref[0:1, :H1P], 0.0)

    # fc2: relu(h1 @ W2 + b2).  Cast the activation to the weight dtype
    # (bf16 fast MXU path); keep the f32 accumulator and f32 epilogue.
    h2 = jnp.dot(h1.astype(w2_ref.dtype), w2_ref[...],
                 preferred_element_type=jnp.float32)
    h2 = jnp.maximum(h2 + p_ref[1:2, :], 0.0)

    # fc3: (1, H2P) . (block_b, H2P)^T contraction -> lane-major (1, block_b)
    # row in f32, so the store is lane-dense instead of a 1-lane masked store.
    q = lax.dot_general(p_ref[2:3, :], h2,
                        dimension_numbers=(((1,), (1,)), ((), ())),
                        preferred_element_type=jnp.float32)
    q = q + p_ref[3:4, 0:1]                      # broadcast b3
    out_ref[...] = q.reshape(out_ref.shape)


def critic_forward(state, action, params, *, block_b=None,
                   compute_dtype=jnp.bfloat16):
    """state: (B, input_dim) f32, action: (B, output_dim) f32 -> (B, 1) f32."""
    w1, b1, w2, b2, w3_row, b3 = params
    B = state.shape[0]
    d_in = w1.shape[0]

    # --- batch tiling: whole batch in one step when it fits, 512-row tiles
    # (multiple of 256) otherwise, so large batches get >= 2 grid steps (v7x
    # megacore) without per-step overhead dominating. ---
    if block_b is None:
        block_b = _round_up(B, 8) if B <= 512 else 512
    assert block_b % 8 == 0, "block_b must be a multiple of 8 sublanes"
    grid_b = -(-B // block_b)
    b_pad = grid_b * block_b

    # Concatenate in the wrapper (XLA fuses it) and cast matmul operands.
    x = jnp.concatenate([state, action], axis=1).astype(compute_dtype)
    if b_pad != B:
        x = jnp.pad(x, ((0, b_pad - B), (0, 0)))

    # --- parameter prep: zero-pad hidden dims to lane multiples and pack the
    # small f32 operands into a single (4, H2P) array. ---
    w1p = jnp.pad(w1, ((0, 0), (0, H1P - H1))).astype(compute_dtype)
    w2p = jnp.pad(w2, ((0, H1P - H1), (0, H2P - H2))).astype(compute_dtype)
    pvec = jnp.zeros((4, H2P), jnp.float32)
    pvec = pvec.at[0, :H1].set(b1.reshape(-1).astype(jnp.float32))
    pvec = pvec.at[1, :H2].set(b2.reshape(-1).astype(jnp.float32))
    pvec = pvec.at[2, :H2].set(w3_row.reshape(-1).astype(jnp.float32))
    pvec = pvec.at[3, 0].set(b3.reshape(()).astype(jnp.float32))

    flops = 2 * b_pad * (d_in * H1P + H1P * H2P + H2P)
    bytes_accessed = (x.size * x.dtype.itemsize
                      + w1p.size * w1p.dtype.itemsize
                      + w2p.size * w2p.dtype.itemsize
                      + pvec.size * 4
                      + b_pad * 4)  # f32 output

    out = pl.pallas_call(
        critic_kernel,
        out_shape=jax.ShapeDtypeStruct((grid_b, 1, block_b), jnp.float32),
        grid=(grid_b,),
        in_specs=[
            pl.BlockSpec((block_b, d_in), lambda i: (i, 0)),   # x tile
            pl.BlockSpec((d_in, H1P), lambda i: (0, 0)),       # W1 (resident)
            pl.BlockSpec((H1P, H2P), lambda i: (0, 0)),        # W2 (resident)
            pl.BlockSpec((4, H2P), lambda i: (0, 0)),          # packed b1/b2/w3/b3
        ],
        out_specs=pl.BlockSpec((1, 1, block_b), lambda i: (i, 0, 0)),
        compiler_params=pltpu.CompilerParams(
            dimension_semantics=("parallel",)),
        cost_estimate=pl.CostEstimate(flops=flops, transcendentals=0,
                                      bytes_accessed=bytes_accessed),
    )(x, w1p, w2p, pvec)

    # (grid_b, 1, block_b) lane-major rows -> (B, 1) column.
    return out.reshape(b_pad, 1)[:B]


def init_critic_params(key, input_dim, output_dim):
    """Deterministic init mimicking nn.Linear: U(-1/sqrt(fan_in), 1/sqrt(fan_in))."""
    def linear(key, fan_in, fan_out):
        kw, kb = jax.random.split(key)
        bound = 1.0 / np.sqrt(fan_in)
        w = jax.random.uniform(kw, (fan_in, fan_out), jnp.float32, -bound, bound)
        b = jax.random.uniform(kb, (1, fan_out), jnp.float32, -bound, bound)
        return w, b

    k1, k2, k3 = jax.random.split(key, 3)
    w1, b1 = linear(k1, input_dim + output_dim, H1)
    w2, b2 = linear(k2, H1, H2)
    w3, b3 = linear(k3, H2, 1)
    # fc3 weight stored pre-transposed as a (1, 300) row; b3 is (1, 1).
    return (w1, b1, w2, b2, w3.T, b3)


def critic_reference(state, action, params):
    w1, b1, w2, b2, w3_row, b3 = params
    x = jnp.concatenate([state, action], axis=1)
    h1 = jax.nn.relu(x @ w1 + b1)
    h2 = jax.nn.relu(h1 @ w2 + b2)
    return h2 @ w3_row.T + b3


if __name__ == "__main__":
    input_dim = 16   # state dimension
    output_dim = 4   # action dimension
    batch = 2

    key = jax.random.PRNGKey(0)
    k_params, k_state, k_action = jax.random.split(key, 3)

    params = init_critic_params(k_params, input_dim, output_dim)
    state = jax.random.normal(k_state, (batch, input_dim), jnp.float32)
    action = jax.random.normal(k_action, (batch, output_dim), jnp.float32)

    q_ref = critic_reference(state, action, params)

    # Exact (debug) path: f32 matmul operands, tight tolerance.
    q_f32 = jax.block_until_ready(
        critic_forward(state, action, params, compute_dtype=jnp.float32))
    np.testing.assert_allclose(np.asarray(q_f32), np.asarray(q_ref),
                               rtol=1e-4, atol=1e-4)

    # Default fast path: bf16 matmul operands, f32 accumulation/epilogue.
    q_bf16 = jax.block_until_ready(critic_forward(state, action, params))
    np.testing.assert_allclose(np.asarray(q_bf16), np.asarray(q_ref),
                               rtol=5e-2, atol=5e-2)

    # Multi-tile grid path (grid_b > 1, padded last tile) to exercise the
    # batch-tiled / lane-major output layout end to end.
    big_b = 144
    ks2, ka2 = jax.random.split(jax.random.PRNGKey(1))
    state2 = jax.random.normal(ks2, (big_b, input_dim), jnp.float32)
    action2 = jax.random.normal(ka2, (big_b, output_dim), jnp.float32)
    q2_ref = critic_reference(state2, action2, params)
    q2 = jax.block_until_ready(
        critic_forward(state2, action2, params, block_b=64))
    np.testing.assert_allclose(np.asarray(q2), np.asarray(q2_ref),
                               rtol=5e-2, atol=5e-2)

    print("KERNEL_OK")
</pallas_src>

<mosaic_0001>
module attributes {stable_mosaic.version = 11 : i64} {
  func.func @critic_kernel(%arg0: i32, %arg1: memref<8x20xf32, #tpu.memory_space<vmem>>, %arg2: memref<20x256xf32, #tpu.memory_space<vmem>>, %arg3: memref<256x384xf32, #tpu.memory_space<vmem>>, %arg4: memref<4x384xf32, #tpu.memory_space<vmem>>, %arg5: memref<1x1x8xf32, #tpu.memory_space<vmem>>) attributes {dimension_semantics = [#tpu.dimension_semantics<parallel>], iteration_bounds = array<i64: 1>, scalar_prefetch = 0 : i64, scratch_operands = 0 : i64, tpu.core_type = #tpu.core_type<tc>, window_params = [{transform_indices = @transform_0, window_bounds = array<i64: 8, 20>}, {pipeline_mode = #tpu.pipeline_mode<synchronous>, transform_indices = @transform_1, window_bounds = array<i64: 20, 256>}, {pipeline_mode = #tpu.pipeline_mode<synchronous>, transform_indices = @transform_2, window_bounds = array<i64: 256, 384>}, {pipeline_mode = #tpu.pipeline_mode<synchronous>, transform_indices = @transform_3, window_bounds = array<i64: 4, 384>}, {transform_indices = @transform_4, window_bounds = array<i64: 1, 1, 8>}]} {
    %c0 = arith.constant 0 : index
    %c0_0 = arith.constant 0 : index
    %0 = vector.load %arg1[%c0, %c0_0] : memref<8x20xf32, #tpu.memory_space<vmem>>, vector<8x20xf32>
    %c0_1 = arith.constant 0 : index
    %c0_2 = arith.constant 0 : index
    %1 = vector.load %arg2[%c0_1, %c0_2] : memref<20x256xf32, #tpu.memory_space<vmem>>, vector<20x256xf32>
    %cst = arith.constant dense<0.000000e+00> : vector<8x256xf32>
    %2 = tpu.matmul %0, %1, %cst {dimension_numbers = #tpu.dot_dimension_numbers<[1], [0], [0], [1], [0, 0, 1, 1], [], []>} : vector<8x20xf32>, vector<20x256xf32>, vector<8x256xf32> -> vector<8x256xf32>
    %c0_3 = arith.constant 0 : index
    %c0_4 = arith.constant 0 : index
    %3 = vector.load %arg4[%c0_3, %c0_4] : memref<4x384xf32, #tpu.memory_space<vmem>>, vector<1x256xf32>
    %4 = vector.broadcast %3 : vector<1x256xf32> to vector<8x256xf32>
    %5 = arith.addf %2, %4 : vector<8x256xf32>
    %cst_5 = arith.constant 0.000000e+00 : f32
    %6 = vector.broadcast %cst_5 : f32 to vector<8x256xf32>
    %7 = arith.maximumf %5, %6 : vector<8x256xf32>
    %c0_6 = arith.constant 0 : index
    %c0_7 = arith.constant 0 : index
    %8 = vector.load %arg3[%c0_6, %c0_7] : memref<256x384xf32, #tpu.memory_space<vmem>>, vector<256x384xf32>
    %cst_8 = arith.constant dense<0.000000e+00> : vector<8x384xf32>
    %9 = tpu.matmul %7, %8, %cst_8 {dimension_numbers = #tpu.dot_dimension_numbers<[1], [0], [0], [1], [0, 0, 1, 1], [], []>} : vector<8x256xf32>, vector<256x384xf32>, vector<8x384xf32> -> vector<8x384xf32>
    %c1 = arith.constant 1 : index
    %c0_9 = arith.constant 0 : index
    %10 = vector.load %arg4[%c1, %c0_9] : memref<4x384xf32, #tpu.memory_space<vmem>>, vector<1x384xf32>
    %11 = vector.broadcast %10 : vector<1x384xf32> to vector<8x384xf32>
    %12 = arith.addf %9, %11 : vector<8x384xf32>
    %cst_10 = arith.constant 0.000000e+00 : f32
    %13 = vector.broadcast %cst_10 : f32 to vector<8x384xf32>
    %14 = arith.maximumf %12, %13 : vector<8x384xf32>
    %c2 = arith.constant 2 : index
    %c0_11 = arith.constant 0 : index
    %15 = vector.load %arg4[%c2, %c0_11] : memref<4x384xf32, #tpu.memory_space<vmem>>, vector<1x384xf32>
    %cst_12 = arith.constant dense<0.000000e+00> : vector<1x8xf32>
    %16 = tpu.matmul %15, %14, %cst_12 {dimension_numbers = #tpu.dot_dimension_numbers<[1], [1], [0], [0], [0, 0, 1, 0], [], []>} : vector<1x384xf32>, vector<8x384xf32>, vector<1x8xf32> -> vector<1x8xf32>
    %c3 = arith.constant 3 : index
    %c0_13 = arith.constant 0 : index
    %17 = vector.load %arg4[%c3, %c0_13] : memref<4x384xf32, #tpu.memory_space<vmem>>, vector<1x1xf32>
    %18 = vector.broadcast %17 : vector<1x1xf32> to vector<1x8xf32>
    %19 = arith.addf %16, %18 : vector<1x8xf32>
    %20 = vector.shape_cast %19 : vector<1x8xf32> to vector<1x1x8xf32>
    %c0_14 = arith.constant 0 : index
    %c0_15 = arith.constant 0 : index
    %c0_16 = arith.constant 0 : index
    %21 = vector.load %arg5[%c0_14, %c0_15, %c0_16] : memref<1x1x8xf32, #tpu.memory_space<vmem>>, vector<1x1x8xf32>
    tpu.vector_store %arg5[%c0_14, %c0_15, %c0_16], %20 {strides = array<i32>} : memref<1x1x8xf32, #tpu.memory_space<vmem>>, vector<1x1x8xf32>,
    return
  }
  func.func @transform_0(%arg0: i32) -> (i32, i32) {
    %c0_i32 = arith.constant 0 : i32
    %c0_i32_0 = arith.constant 0 : i32
    return %arg0, %c0_i32 : i32, i32
  }
  func.func @transform_1(%arg0: i32) -> (i32, i32) {
    %c0_i32 = arith.constant 0 : i32
    %c0_i32_0 = arith.constant 0 : i32
    %c0_i32_1 = arith.constant 0 : i32
    return %c0_i32, %c0_i32_0 : i32, i32
  }
  func.func @transform_2(%arg0: i32) -> (i32, i32) {
    %c0_i32 = arith.constant 0 : i32
    %c0_i32_0 = arith.constant 0 : i32
    %c0_i32_1 = arith.constant 0 : i32
    return %c0_i32, %c0_i32_0 : i32, i32
  }
  func.func @transform_3(%arg0: i32) -> (i32, i32) {
    %c0_i32 = arith.constant 0 : i32
    %c0_i32_0 = arith.constant 0 : i32
    %c0_i32_1 = arith.constant 0 : i32
    return %c0_i32, %c0_i32_0 : i32, i32
  }
  func.func @transform_4(%arg0: i32) -> (i32, i32, i32) {
    %c0_i32 = arith.constant 0 : i32
    %c0_i32_0 = arith.constant 0 : i32
    %c0_i32_1 = arith.constant 0 : i32
    return %arg0, %c0_i32, %c0_i32_0 : i32, i32, i32
  }
}

</mosaic_0001>

<llo_original>
// kernel: tpu_custom_call.1
$region0: #{tpu_custom_call.1}
  #allocation0 [shape = 'u32[]', space=smem, size = 0x4, offset = 0x4, fixed_abs, tag = 'smem constant byte address 0x4 - core index']
  #allocation1 [shape = 'u32[72,128]{1,0:T(1,128)}', space=vmem, size = 0x9000, scoped, tag = 'internal scratch']
  %s0 = inlined_call_operand.hbm [shape: f32[8,20], index: 0, kind: input, shape index: {}]
  %s1 = inlined_call_operand.hbm [shape: f32[20,256], index: 1, kind: input, shape index: {}]
  %s2 = inlined_call_operand.hbm [shape: f32[256,384], index: 2, kind: input, shape index: {}]
  %s3 = inlined_call_operand.hbm [shape: f32[4,384], index: 3, kind: input, shape index: {}]
  %s4 = inlined_call_operand.hbm [shape: f32[1,1,8], index: 4, kind: output, shape index: {}]
  %s5 = sld [smem:[#allocation0]]
  $region42: #{tpu_custom_call.1} parent=0
    _
  %s7 = ssub.s32 1, %s5
  %s8 = scalar_select 0, %s7, %s5
  $region1: #{tpu_custom_call.1} parent=0
    #allocation2 [shape = 'u8[4096]{0}', space=vmem, size = 0x1000, scoped, tag = 'input window, operand 0, single buffered']
    #allocation3 [shape = 's32[1]{0}', space=sflag, size = 0x4, scoped, tag = 'scoped memory for tpu_custom_call.1']
    #allocation4 [shape = 's32[1]{0}', space=sflag, size = 0x4, scoped, tag = 'scoped memory for tpu_custom_call.1']
    #allocation5 [shape = 'u8[24576]{0}', space=vmem, size = 0x6000, scoped, tag = 'input window, operand 1, single buffered']
    #allocation6 [shape = 's32[1]{0}', space=sflag, size = 0x4, scoped, tag = 'scoped memory for tpu_custom_call.1']
    #allocation7 [shape = 'u8[393216]{0}', space=vmem, size = 0x60000, scoped, tag = 'input window, operand 2, single buffered']
    #allocation8 [shape = 'u8[6144]{0}', space=vmem, size = 0x1800, scoped, tag = 'input window, operand 3, single buffered']
    #allocation9 [shape = 's32[1]{0}', space=sflag, size = 0x4, scoped, tag = 'scoped memory for tpu_custom_call.1']
    #allocation10 [shape = 'u8[512]{0}', space=vmem, size = 0x400, scoped, tag = 'output window, operand 0, single buffered']
    %9 = vsyncpa [#allocation3], 0
    %10 = vsyncpa [#allocation6], 0
    %11 = vsyncpa [#allocation9], 0
    %12 = vsyncpa [#allocation4], 0
    // Predicated region
    $region2: #{tpu_custom_call.1} parent=1 // pred_check
      _
    $region3: #{tpu_custom_call.1} parent=1 // pred_check_branch
      %14 = sbr.rel (0) target = $region5
    $region4: #{tpu_custom_call.1} parent=1 // pred_region
      %16 = vsyncadd [#allocation3], 0
      %s18 = sshll.u32 %s0, 4
      %s19 = int_to_ptr.hbm [resolvable:$true] %s18
      %s20 = sshll.u32 [#allocation2], 4
      %s21 = int_to_ptr.vmem [resolvable:$true] %s20
      %23 = dma.hbm_to_vmem [thread:$0]  %s19, 128, %s21, [#allocation3]
    $region5: #{tpu_custom_call.1} parent=1 // pred_fallthru
      _
    // Predicated region
    $region6: #{tpu_custom_call.1} parent=1 // pred_check
      _
    $region7: #{tpu_custom_call.1} parent=1 // pred_check_branch
      %25 = sbr.rel (0) target = $region9
    $region8: #{tpu_custom_call.1} parent=1 // pred_region
      %27 = vsyncadd [#allocation6], 0
      %s28 = sshll.u32 %s1, 4
      %s29 = int_to_ptr.hbm [resolvable:$true] %s28
      %s30 = sshll.u32 [#allocation5], 4
      %s31 = int_to_ptr.vmem [resolvable:$true] %s30
      %36 = dma.hbm_to_vmem [thread:$0]  %s29, 768, %s31, [#allocation6], 256, 256, 16
    $region9: #{tpu_custom_call.1} parent=1 // pred_fallthru
      _
    // Predicated region
    $region10: #{tpu_custom_call.1} parent=1 // pred_check
      _
    $region11: #{tpu_custom_call.1} parent=1 // pred_check_branch
      %38 = sbr.rel (0) target = $region13
    $region12: #{tpu_custom_call.1} parent=1 // pred_region
      %40 = vsyncadd [#allocation6], 0
      %s41 = sshll.u32 %s2, 4
      %s42 = int_to_ptr.hbm [resolvable:$true] %s41
      %s43 = sshll.u32 [#allocation7], 4
      %s44 = int_to_ptr.vmem [resolvable:$true] %s43
      %49 = dma.hbm_to_vmem [thread:$0]  %s42, 12288, %s44, [#allocation6], 384, 384, 24
    $region13: #{tpu_custom_call.1} parent=1 // pred_fallthru
      _
    // Predicated region
    $region14: #{tpu_custom_call.1} parent=1 // pred_check
      _
    $region15: #{tpu_custom_call.1} parent=1 // pred_check_branch
      %51 = sbr.rel (0) target = $region17
    $region16: #{tpu_custom_call.1} parent=1 // pred_region
      %53 = vsyncadd [#allocation9], 0
      %s55 = sshll.u32 %s3, 4
      %s56 = int_to_ptr.hbm [resolvable:$true] %s55
      %s57 = sshll.u32 [#allocation8], 4
      %s58 = int_to_ptr.vmem [resolvable:$true] %s57
      %60 = dma.hbm_to_vmem [thread:$0]  %s56, 192, %s58, [#allocation9]
    $region17: #{tpu_custom_call.1} parent=1 // pred_fallthru
      _
    // Predicated region
    $region18: #{tpu_custom_call.1} parent=1 // pred_check
      _
    $region19: #{tpu_custom_call.1} parent=1 // pred_check_branch
      %62 = sbr.rel (0) target = $region21
    $region20: #{tpu_custom_call.1} parent=1 // pred_region
      %64 = dma.done [#allocation3], 128
    $region21: #{tpu_custom_call.1} parent=1 // pred_fallthru
      _
    // Predicated region
    $region22: #{tpu_custom_call.1} parent=1 // pred_check
      _
    $region23: #{tpu_custom_call.1} parent=1 // pred_check_branch
      %66 = sbr.rel (0) target = $region25
    $region24: #{tpu_custom_call.1} parent=1 // pred_region
      %68 = dma.done [#allocation6], 768
    $region25: #{tpu_custom_call.1} parent=1 // pred_fallthru
      _
    // Predicated region
    $region26: #{tpu_custom_call.1} parent=1 // pred_check
      _
    $region27: #{tpu_custom_call.1} parent=1 // pred_check_branch
      %70 = sbr.rel (0) target = $region29
    $region28: #{tpu_custom_call.1} parent=1 // pred_region
      %72 = dma.done [#allocation6], 12288
    $region29: #{tpu_custom_call.1} parent=1 // pred_fallthru
      _
    // Predicated region
    $region30: #{tpu_custom_call.1} parent=1 // pred_check
      _
    $region31: #{tpu_custom_call.1} parent=1 // pred_check_branch
      %74 = sbr.rel (0) target = $region33
    $region32: #{tpu_custom_call.1} parent=1 // pred_region
      %76 = dma.done [#allocation9], 192
    $region33: #{tpu_custom_call.1} parent=1 // pred_fallthru
      _
    %v77 = vld [vmem:[#allocation2] sm:$0xff]
    %v78 = vld [vmem:[#allocation5] sm:$0xff]
    %v79 = vld [vmem:[#allocation5 + $0x8] sm:$0xff]
    %v80 = vld [vmem:[#allocation5 + $0x10] sm:$0xff]
    %v81 = vld [vmem:[#allocation5 + $0x18] sm:$0xff]
    %v82 = vld [vmem:[#allocation5 + $0x20] sm:$0xf]
    %v83 = vld [vmem:[#allocation5 + $0x28] sm:$0xf]
    %v84 = vld [vmem:[#allocation8] ss:$4 sm:$0x3]
    %v86 = vperm.slane %v84, 0
    %v87 = vperm.slane %v84, 1
    %vm90 = vcmask 162816
    %v92 = vsel %vm90, %v77, 0
    %vm94 = vcmask 1043456
    %v96 = vsel %vm94, %v82, 0
    %v99 = vsel %vm94, %v83, 0
    %101 = vmatpush.msra.mxu0 0.0
    %102 = vmatpush.msra.mxu0 0.0
    %103 = vmatpush.msra.mxu0 0.0
    %104 = vmatpush.msra.mxu0 0.0
    %105 = vmatpush.msra.mxu0 0.0
    %106 = vmatpush.msra.mxu0 0.0
    %107 = vmatpush.msra.mxu0 0.0
    %108 = vmatpush.msra.mxu0 0.0
    %109 = vmatpush.msra.mxu0 0.0
    %110 = vmatpush.msra.mxu0 0.0
    %111 = vmatpush.msra.mxu0 0.0
    %112 = vmatpush.msra.mxu0 0.0
    %113 = vmatpush.msra.mxu0 0.0
    %114 = vmatpush.msra.mxu0 %v96
    %115 = vmatpush.msra.mxu0 %v80
    %116 = vmatpush.msra.mxu0 %v78
    %117 = vmatmul.f32.gmra.mxu0 %v92
    %v118 = vpop.f32.mrf.mxu0
    %v119 = vadd.f32 %v86, %v118
    %120 = vdwg.mxu0
    %121 = vmatpush.msra.mxu0 0.0
    %122 = vmatpush.msra.mxu0 0.0
    %123 = vmatpush.msra.mxu0 0.0
    %124 = vmatpush.msra.mxu0 0.0
    %125 = vmatpush.msra.mxu0 0.0
    %126 = vmatpush.msra.mxu0 0.0
    %127 = vmatpush.msra.mxu0 0.0
    %128 = vmatpush.msra.mxu0 0.0
    %129 = vmatpush.msra.mxu0 0.0
    %130 = vmatpush.msra.mxu0 0.0
    %131 = vmatpush.msra.mxu0 0.0
    %132 = vmatpush.msra.mxu0 0.0
    %133 = vmatpush.msra.mxu0 0.0
    %134 = vmatpush.msra.mxu0 %v99
    %135 = vmatpush.msra.mxu0 %v81
    %136 = vmatpush.msra.mxu0 %v79
    %137 = vmatmul.f32.gmra.mxu0 %v92
    %v138 = vpop.f32.mrf.mxu0
    %v139 = vadd.f32 %v87, %v138
    %140 = vdwg.mxu0
    %v141 = vmax.f32 %v119, 0.0
    %v142 = vmax.f32 %v139, 0.0
    %v143 = vld [vmem:[#allocation7] sm:$0xff]
    %v144 = vld [vmem:[#allocation7 + $0x8] sm:$0xff]
    %v145 = vld [vmem:[#allocation7 + $0x10] sm:$0xff]
    %v146 = vld [vmem:[#allocation7 + $0x18] sm:$0xff]
    %v147 = vld [vmem:[#allocation7 + $0x20] sm:$0xff]
    %v148 = vld [vmem:[#allocation7 + $0x28] sm:$0xff]
    %v149 = vld [vmem:[#allocation7 + $0x30] sm:$0xff]
    %v150 = vld [vmem:[#allocation7 + $0x38] sm:$0xff]
    %v151 = vld [vmem:[#allocation7 + $0x40] sm:$0xff]
    %v152 = vld [vmem:[#allocation7 + $0x48] sm:$0xff]
    %v153 = vld [vmem:[#allocation7 + $0x50] sm:$0xff]
    %v154 = vld [vmem:[#allocation7 + $0x58] sm:$0xff]
    %v155 = vld [vmem:[#allocation7 + $0x60] sm:$0xff]
    %v156 = vld [vmem:[#allocation7 + $0x68] sm:$0xff]
    %v157 = vld [vmem:[#allocation7 + $0x70] sm:$0xff]
    %v158 = vld [vmem:[#allocation7 + $0x78] sm:$0xff]
    %v159 = vld [vmem:[#allocation7 + $0x80] sm:$0xff]
    %v160 = vld [vmem:[#allocation7 + $0x88] sm:$0xff]
    %v161 = vld [vmem:[#allocation7 + $0x90] sm:$0xff]
    %v162 = vld [vmem:[#allocation7 + $0x98] sm:$0xff]
    %v163 = vld [vmem:[#allocation7 + $0xa0] sm:$0xff]
    %v164 = vld [vmem:[#allocation7 + $0xa8] sm:$0xff]
    %v165 = vld [vmem:[#allocation7 + $0xb0] sm:$0xff]
    %v166 = vld [vmem:[#allocation7 + $0xb8] sm:$0xff]
    %v167 = vld [vmem:[#allocation7 + $0xc0] sm:$0xff]
    %v168 = vld [vmem:[#allocation7 + $0xc8] sm:$0xff]
    %v169 = vld [vmem:[#allocation7 + $0xd0] sm:$0xff]
    %v170 = vld [vmem:[#allocation7 + $0xd8] sm:$0xff]
    %v171 = vld [vmem:[#allocation7 + $0xe0] sm:$0xff]
    %v172 = vld [vmem:[#allocation7 + $0xe8] sm:$0xff]
    %v173 = vld [vmem:[#allocation7 + $0xf0] sm:$0xff]
    %v174 = vld [vmem:[#allocation7 + $0xf8] sm:$0xff]
    %v175 = vld [vmem:[#allocation7 + $0x100] sm:$0xff]
    %v176 = vld [vmem:[#allocation7 + $0x108] sm:$0xff]
    %v177 = vld [vmem:[#allocation7 + $0x110] sm:$0xff]
    %v178 = vld [vmem:[#allocation7 + $0x118] sm:$0xff]
    %v179 = vld [vmem:[#allocation7 + $0x120] sm:$0xff]
    %v180 = vld [vmem:[#allocation7 + $0x128] sm:$0xff]
    %v181 = vld [vmem:[#allocation7 + $0x130] sm:$0xff]
    %v182 = vld [vmem:[#allocation7 + $0x138] sm:$0xff]
    %v183 = vld [vmem:[#allocation7 + $0x140] sm:$0xff]
    %v184 = vld [vmem:[#allocation7 + $0x148] sm:$0xff]
    %v185 = vld [vmem:[#allocation7 + $0x150] sm:$0xff]
    %v186 = vld [vmem:[#allocation7 + $0x158] sm:$0xff]
    %v187 = vld [vmem:[#allocation7 + $0x160] sm:$0xff]
    %v188 = vld [vmem:[#allocation7 + $0x168] sm:$0xff]
    %v189 = vld [vmem:[#allocation7 + $0x170] sm:$0xff]
    %v190 = vld [vmem:[#allocation7 + $0x178] sm:$0xff]
    %v191 = vld [vmem:[#allocation7 + $0x180] sm:$0xff]
    %v192 = vld [vmem:[#allocation7 + $0x188] sm:$0xff]
    %v193 = vld [vmem:[#allocation7 + $0x190] sm:$0xff]
    %v194 = vld [vmem:[#allocation7 + $0x198] sm:$0xff]
    %v195 = vld [vmem:[#allocation7 + $0x1a0] sm:$0xff]
    %v196 = vld [vmem:[#allocation7 + $0x1a8] sm:$0xff]
    %v197 = vld [vmem:[#allocation7 + $0x1b0] sm:$0xff]
    %v198 = vld [vmem:[#allocation7 + $0x1b8] sm:$0xff]
    %v199 = vld [vmem:[#allocation7 + $0x1c0] sm:$0xff]
    %v200 = vld [vmem:[#allocation7 + $0x1c8] sm:$0xff]
    %v201 = vld [vmem:[#allocation7 + $0x1d0] sm:$0xff]
    %v202 = vld [vmem:[#allocation7 + $0x1d8] sm:$0xff]
    %v203 = vld [vmem:[#allocation7 + $0x1e0] sm:$0xff]
    %v204 = vld [vmem:[#allocation7 + $0x1e8] sm:$0xff]
    %v205 = vld [vmem:[#allocation7 + $0x1f0] sm:$0xff]
    %v206 = vld [vmem:[#allocation7 + $0x1f8] sm:$0xff]
    %v207 = vld [vmem:[#allocation7 + $0x200] sm:$0xff]
    %v208 = vld [vmem:[#allocation7 + $0x208] sm:$0xff]
    %v209 = vld [vmem:[#allocation7 + $0x210] sm:$0xff]
    %v210 = vld [vmem:[#allocation7 + $0x218] sm:$0xff]
    %v211 = vld [vmem:[#allocation7 + $0x220] sm:$0xff]
    %v212 = vld [vmem:[#allocation7 + $0x228] sm:$0xff]
    %v213 = vld [vmem:[#allocation7 + $0x230] sm:$0xff]
    %v214 = vld [vmem:[#allocation7 + $0x238] sm:$0xff]
    %v215 = vld [vmem:[#allocation7 + $0x240] sm:$0xff]
    %v216 = vld [vmem:[#allocation7 + $0x248] sm:$0xff]
    %v217 = vld [vmem:[#allocation7 + $0x250] sm:$0xff]
    %v218 = vld [vmem:[#allocation7 + $0x258] sm:$0xff]
    %v219 = vld [vmem:[#allocation7 + $0x260] sm:$0xff]
    %v220 = vld [vmem:[#allocation7 + $0x268] sm:$0xff]
    %v221 = vld [vmem:[#allocation7 + $0x270] sm:$0xff]
    %v222 = vld [vmem:[#allocation7 + $0x278] sm:$0xff]
    %v223 = vld [vmem:[#allocation7 + $0x280] sm:$0xff]
    %v224 = vld [vmem:[#allocation7 + $0x288] sm:$0xff]
    %v225 = vld [vmem:[#allocation7 + $0x290] sm:$0xff]
    %v226 = vld [vmem:[#allocation7 + $0x298] sm:$0xff]
    %v227 = vld [vmem:[#allocation7 + $0x2a0] sm:$0xff]
    %v228 = vld [vmem:[#allocation7 + $0x2a8] sm:$0xff]
    %v229 = vld [vmem:[#allocation7 + $0x2b0] sm:$0xff]
    %v230 = vld [vmem:[#allocation7 + $0x2b8] sm:$0xff]
    %v231 = vld [vmem:[#allocation7 + $0x2c0] sm:$0xff]
    %v232 = vld [vmem:[#allocation7 + $0x2c8] sm:$0xff]
    %v233 = vld [vmem:[#allocation7 + $0x2d0] sm:$0xff]
    %v234 = vld [vmem:[#allocation7 + $0x2d8] sm:$0xff]
    %v235 = vld [vmem:[#allocation7 + $0x2e0] sm:$0xff]
    %v236 = vld [vmem:[#allocation7 + $0x2e8] sm:$0xff]
    %v237 = vld [vmem:[#allocation7 + $0x2f0] sm:$0xff]
    %v238 = vld [vmem:[#allocation7 + $0x2f8] sm:$0xff]
    %s239 = scalar_lea.vmem [#allocation8], 1
    %v240 = vld [vmem:[%s239] ss:$4 sm:$0x7]
    %v242 = vperm.slane %v240, 0
    %v243 = vperm.slane %v240, 1
    %v244 = vperm.slane %v240, 2
    %248 = vmatpush.msra.mxu0 %v188
    %249 = vmatpush.msra.mxu0 %v185
    %250 = vmatpush.msra.mxu0 %v182
    %251 = vmatpush.msra.mxu0 %v179
    %252 = vmatpush.msra.mxu0 %v176
    %253 = vmatpush.msra.mxu0 %v173
    %254 = vmatpush.msra.mxu0 %v170
    %255 = vmatpush.msra.mxu0 %v167
    %256 = vmatpush.msra.mxu0 %v164
    %257 = vmatpush.msra.mxu0 %v161
    %258 = vmatpush.msra.mxu0 %v158
    %259 = vmatpush.msra.mxu0 %v155
    %260 = vmatpush.msra.mxu0 %v152
    %261 = vmatpush.msra.mxu0 %v149
    %262 = vmatpush.msra.mxu0 %v146
    %263 = vmatpush.msra.mxu0 %v143
    %264 = vmatmul.f32.gmra.mxu0 %v141
    %v265 = vpop.f32.mrf.mxu0
    %v266 = vadd.f32 %v242, %v265
    %267 = vdwg.mxu0
    %268 = vmatpush.msra.mxu0 %v236
    %269 = vmatpush.msra.mxu0 %v233
    %270 = vmatpush.msra.mxu0 %v230
    %271 = vmatpush.msra.mxu0 %v227
    %272 = vmatpush.msra.mxu0 %v224
    %273 = vmatpush.msra.mxu0 %v221
    %274 = vmatpush.msra.mxu0 %v218
    %275 = vmatpush.msra.mxu0 %v215
    %276 = vmatpush.msra.mxu0 %v212
    %277 = vmatpush.msra.mxu0 %v209
    %278 = vmatpush.msra.mxu0 %v206
    %279 = vmatpush.msra.mxu0 %v203
    %280 = vmatpush.msra.mxu0 %v200
    %281 = vmatpush.msra.mxu0 %v197
    %282 = vmatpush.msra.mxu0 %v194
    %283 = vmatpush.msra.mxu0 %v191
    %284 = vmatmul.f32.gmra.mxu0 %v142
    %v285 = vpop.f32.mrf.mxu0
    %v286 = vadd.f32 %v266, %v285
    %287 = vdwg.mxu0
    %288 = vmatpush.msra.mxu0 %v189
    %289 = vmatpush.msra.mxu0 %v186
    %290 = vmatpush.msra.mxu0 %v183
    %291 = vmatpush.msra.mxu0 %v180
    %292 = vmatpush.msra.mxu0 %v177
    %293 = vmatpush.msra.mxu0 %v174
    %294 = vmatpush.msra.mxu0 %v171
    %295 = vmatpush.msra.mxu0 %v168
    %296 = vmatpush.msra.mxu0 %v165
    %297 = vmatpush.msra.mxu0 %v162
    %298 = vmatpush.msra.mxu0 %v159
    %299 = vmatpush.msra.mxu0 %v156
    %300 = vmatpush.msra.mxu0 %v153
    %301 = vmatpush.msra.mxu0 %v150
    %302 = vmatpush.msra.mxu0 %v147
    %303 = vmatpush.msra.mxu0 %v144
    %304 = vmatmul.f32.gmra.mxu0 %v141
    %v305 = vpop.f32.mrf.mxu0
    %v306 = vadd.f32 %v243, %v305
    %307 = vdwg.mxu0
    %308 = vmatpush.msra.mxu0 %v237
    %309 = vmatpush.msra.mxu0 %v234
    %310 = vmatpush.msra.mxu0 %v231
    %311 = vmatpush.msra.mxu0 %v228
    %312 = vmatpush.msra.mxu0 %v225
    %313 = vmatpush.msra.mxu0 %v222
    %314 = vmatpush.msra.mxu0 %v219
    %315 = vmatpush.msra.mxu0 %v216
    %316 = vmatpush.msra.mxu0 %v213
    %317 = vmatpush.msra.mxu0 %v210
    %318 = vmatpush.msra.mxu0 %v207
    %319 = vmatpush.msra.mxu0 %v204
    %320 = vmatpush.msra.mxu0 %v201
    %321 = vmatpush.msra.mxu0 %v198
    %322 = vmatpush.msra.mxu0 %v195
    %323 = vmatpush.msra.mxu0 %v192
    %324 = vmatmul.f32.gmra.mxu0 %v142
    %v325 = vpop.f32.mrf.mxu0
    %v326 = vadd.f32 %v306, %v325
    %327 = vdwg.mxu0
    %328 = vmatpush.msra.mxu0 %v190
    %329 = vmatpush.msra.mxu0 %v187
    %330 = vmatpush.msra.mxu0 %v184
    %331 = vmatpush.msra.mxu0 %v181
    %332 = vmatpush.msra.mxu0 %v178
    %333 = vmatpush.msra.mxu0 %v175
    %334 = vmatpush.msra.mxu0 %v172
    %335 = vmatpush.msra.mxu0 %v169
    %336 = vmatpush.msra.mxu0 %v166
    %337 = vmatpush.msra.mxu0 %v163
    %338 = vmatpush.msra.mxu0 %v160
    %339 = vmatpush.msra.mxu0 %v157
    %340 = vmatpush.msra.mxu0 %v154
    %341 = vmatpush.msra.mxu0 %v151
    %342 = vmatpush.msra.mxu0 %v148
    %343 = vmatpush.msra.mxu0 %v145
    %344 = vmatmul.f32.gmra.mxu0 %v141
    %v345 = vpop.f32.mrf.mxu0
    %v346 = vadd.f32 %v244, %v345
    %347 = vdwg.mxu0
    %348 = vmatpush.msra.mxu0 %v238
    %349 = vmatpush.msra.mxu0 %v235
    %350 = vmatpush.msra.mxu0 %v232
    %351 = vmatpush.msra.mxu0 %v229
    %352 = vmatpush.msra.mxu0 %v226
    %353 = vmatpush.msra.mxu0 %v223
    %354 = vmatpush.msra.mxu0 %v220
    %355 = vmatpush.msra.mxu0 %v217
    %356 = vmatpush.msra.mxu0 %v214
    %357 = vmatpush.msra.mxu0 %v211
    %358 = vmatpush.msra.mxu0 %v208
    %359 = vmatpush.msra.mxu0 %v205
    %360 = vmatpush.msra.mxu0 %v202
    %361 = vmatpush.msra.mxu0 %v199
    %362 = vmatpush.msra.mxu0 %v196
    %363 = vmatpush.msra.mxu0 %v193
    %364 = vmatmul.f32.gmra.mxu0 %v142
    %v365 = vpop.f32.mrf.mxu0
    %v366 = vadd.f32 %v346, %v365
    %367 = vdwg.mxu0
    %v368 = vmax.f32 %v286, 0.0
    %v369 = vmax.f32 %v326, 0.0
    %v370 = vmax.f32 %v366, 0.0
    %s371 = scalar_lea.vmem [#allocation8], 2
    %v372 = vld [vmem:[%s371] ss:$4 sm:$0x7]
    %v373 = vld [vmem:[#allocation8 + $0x3] sm:$0x1]
    %375 = vset.pattern.permute.xlu0 0
    %376 = vperm.xlu0 %375, %v373
    %v377 = vpop.permute.xlu0 %376
    %v380 = vunpack.c.l.s4 839922192
    %v381 = vunpack.c.0.s8 %v380
    %v382 = vperm.slane %v377, %v381
    %v384 = vperm.slane %v372, 0
    %v385 = vperm.slane %v372, 1
    %v386 = vperm.slane %v372, 2
    %390 = vmatpush.xpose.msra.mxu0 0.0
    %391 = vmatpush.xpose.msra.mxu0 0.0
    %392 = vmatpush.xpose.msra.mxu0 0.0
    %393 = vmatpush.xpose.msra.mxu0 0.0
    %394 = vmatpush.xpose.msra.mxu0 0.0
    %395 = vmatpush.xpose.msra.mxu0 0.0
    %396 = vmatpush.xpose.msra.mxu0 0.0
    %397 = vmatpush.xpose.msra.mxu0 0.0
    %398 = vmatpush.xpose.msra.mxu0 0.0
    %399 = vmatpush.xpose.msra.mxu0 0.0
    %400 = vmatpush.xpose.msra.mxu0 0.0
    %401 = vmatpush.xpose.msra.mxu0 0.0
    %402 = vmatpush.xpose.msra.mxu0 0.0
    %403 = vmatpush.xpose.msra.mxu0 0.0
    %404 = vmatpush.xpose.msra.mxu0 0.0
    %405 = vmatpush.xpose.msra.mxu0 %v368
    %406 = vmatmul.f32.gmra.mxu0 %v384
    %v407 = vpop.f32.mrf.mxu0
    %v408 = vadd.f32 %v382, %v407
    %409 = vdwg.mxu0
    %410 = vmatpush.xpose.msra.mxu0 0.0
    %411 = vmatpush.xpose.msra.mxu0 0.0
    %412 = vmatpush.xpose.msra.mxu0 0.0
    %413 = vmatpush.xpose.msra.mxu0 0.0
    %414 = vmatpush.xpose.msra.mxu0 0.0
    %415 = vmatpush.xpose.msra.mxu0 0.0
    %416 = vmatpush.xpose.msra.mxu0 0.0
    %417 = vmatpush.xpose.msra.mxu0 0.0
    %418 = vmatpush.xpose.msra.mxu0 0.0
    %419 = vmatpush.xpose.msra.mxu0 0.0
    %420 = vmatpush.xpose.msra.mxu0 0.0
    %421 = vmatpush.xpose.msra.mxu0 0.0
    %422 = vmatpush.xpose.msra.mxu0 0.0
    %423 = vmatpush.xpose.msra.mxu0 0.0
    %424 = vmatpush.xpose.msra.mxu0 0.0
    %425 = vmatpush.xpose.msra.mxu0 %v369
    %426 = vmatmul.f32.gmra.mxu0 %v385
    %v427 = vpop.f32.mrf.mxu0
    %v428 = vadd.f32 %v408, %v427
    %429 = vdwg.mxu0
    %430 = vmatpush.xpose.msra.mxu0 0.0
    %431 = vmatpush.xpose.msra.mxu0 0.0
    %432 = vmatpush.xpose.msra.mxu0 0.0
    %433 = vmatpush.xpose.msra.mxu0 0.0
    %434 = vmatpush.xpose.msra.mxu0 0.0
    %435 = vmatpush.xpose.msra.mxu0 0.0
    %436 = vmatpush.xpose.msra.mxu0 0.0
    %437 = vmatpush.xpose.msra.mxu0 0.0
    %438 = vmatpush.xpose.msra.mxu0 0.0
    %439 = vmatpush.xpose.msra.mxu0 0.0
    %440 = vmatpush.xpose.msra.mxu0 0.0
    %441 = vmatpush.xpose.msra.mxu0 0.0
    %442 = vmatpush.xpose.msra.mxu0 0.0
    %443 = vmatpush.xpose.msra.mxu0 0.0
    %444 = vmatpush.xpose.msra.mxu0 0.0
    %445 = vmatpush.xpose.msra.mxu0 %v370
    %446 = vmatmul.f32.gmra.mxu0 %v386
    %v447 = vpop.f32.mrf.mxu0
    %v448 = vadd.f32 %v428, %v447
    %449 = vdwg.mxu0
    %vm450 = vcmask 57344
    %451 = vst.msk [vmem:[#allocation10] sm:$0x1] %vm450, %v448
    // Predicated region
    $region34: #{tpu_custom_call.1} parent=1 // pred_check
      _
    $region35: #{tpu_custom_call.1} parent=1 // pred_check_branch
      %453 = sbr.rel (0) target = $region37
    $region36: #{tpu_custom_call.1} parent=1 // pred_region
      %455 = vsyncadd [#allocation4], 0
      %s457 = sshll.u32 [#allocation10], 4
      %s458 = int_to_ptr.vmem [resolvable:$true] %s457
      %s459 = sshll.u32 %s4, 4
      %s460 = int_to_ptr.hbm [resolvable:$true] %s459
      %462 = dma.vmem_to_hbm [thread:$0]  %s458, 16, %s460, [#allocation4]
    $region37: #{tpu_custom_call.1} parent=1 // pred_fallthru
      _
    // Predicated region
    $region38: #{tpu_custom_call.1} parent=1 // pred_check
      _
    $region39: #{tpu_custom_call.1} parent=1 // pred_check_branch
      %464 = sbr.rel (0) target = $region41
    $region40: #{tpu_custom_call.1} parent=1 // pred_region
      %466 = dma.done [#allocation4], 16
    $region41: #{tpu_custom_call.1} parent=1 // pred_fallthru
      _
    %467 = vsyncpa [#allocation3], 1
    %468 = vsyncpa [#allocation6], 1
    %469 = vsyncpa [#allocation9], 1
    %470 = vsyncpa [#allocation4], 1

</llo_original>
